<compile_context>
chip_gen: v7x
topology: tpu7x:2x2x1
jax: 0.10.0
libtpu: 0.0.40
codegen_flags: <defaults>
</compile_context>

<pallas_src>
import functools

import jax
import jax.numpy as jnp
from jax import lax
from jax.experimental import pallas as pl
from jax.experimental.pallas import tpu as pltpu

NEG_INF = -1.0e8  # stands in for opt.neg_inf (only needed by the pure-JAX reference)


def _choose_bblk(batch, seq_len, num_class, itemsize, budget_bytes=8 << 20):
    """Largest divisor of `batch` whose double-buffered score block fits the budget."""
    per_batch = 2 * seq_len * num_class * itemsize  # x2: pipeline double-buffering
    best = 1
    for d in range(1, batch + 1):
        if batch % d == 0 and d * per_batch <= budget_bytes:
            best = d
    return best


def _vnclass_loss_kernel(
    score_ref,     # (Bblk, L, C)  float   VMEM : streamed score slab for this batch block
    v_label_ref,   # (Bblk, T, 1)  int32   VMEM : seq position of each verb proposal
    v_l_ref,       # (Bblk, 1, 1)  int32   VMEM : number of valid proposals per batch
    v_gold_ref,    # (Bblk, T, 1)  int32   VMEM : gold VN class id per proposal
    out_ref,       # (1, 8, 128)   float32 VMEM : lane-dense packed partials
    *,
    b_blk: int,
    max_v_l: int,
    seq_len: int,
    num_class: int,
):
    score = score_ref[...].astype(jnp.float32)      # (Bblk, L, C)
    labels = v_label_ref[...]                       # (Bblk, T, 1)
    gold = v_gold_ref[...]                          # (Bblk, T, 1)
    v_l = v_l_ref[...]                              # (Bblk, 1, 1)

    # ------------------------------------------------------------------
    # In-VMEM gather via one-hot matmul on the (otherwise idle) MXU.
    # rows[b,t,:] == score[b, v_label[b,t], :] exactly (single 1.0 per row);
    # out-of-range labels (padding) just produce a zero row, which is gated below.
    # ------------------------------------------------------------------
    l_iota = lax.broadcasted_iota(jnp.int32, (b_blk, max_v_l, seq_len), 2)
    onehot = (l_iota == labels).astype(jnp.float32)                       # (Bblk, T, L)
    rows = jnp.einsum(
        "btl,blc->btc", onehot, score, preferred_element_type=jnp.float32
    )                                                                     # (Bblk, T, C)

    # Validity mask: t < v_l[b].
    t_iota = lax.broadcasted_iota(jnp.int32, (b_blk, max_v_l, 1), 1)
    valid = t_iota < v_l                                                  # (Bblk, T, 1)

    # Log-softmax pieces (max-shifted), fused NLL: nll = m + logZ - score[gold].
    m = jnp.max(rows, axis=-1, keepdims=True)                             # (Bblk, T, 1)
    logz = jnp.log(jnp.sum(jnp.exp(rows - m), axis=-1, keepdims=True))    # (Bblk, T, 1)
    lanes = lax.broadcasted_iota(jnp.int32, (b_blk, max_v_l, num_class), 2)
    gold_score = jnp.sum(
        jnp.where(lanes == gold, rows, jnp.float32(0.0)), axis=-1, keepdims=True
    )                                                                     # (Bblk, T, 1)
    nll = m + logz - gold_score                                           # (Bblk, T, 1)

    # argmax with first-occurrence tie break (matches torch.argmax), reusing `m`.
    first_max = jnp.min(
        jnp.where(rows == m, lanes, jnp.int32(num_class)), axis=-1, keepdims=True
    )                                                                     # (Bblk, T, 1)
    correct = valid & (first_max == gold)                                 # (Bblk, T, 1)

    # Per-block partial reductions.  Invalid/padded proposals hold real finite scores
    # (no neg_inf / stale VMEM), and every derived quantity is gated by `valid` here,
    # which is exactly equivalent to the PyTorch masking + gating.
    loss_sum = jnp.sum(jnp.where(valid, nll, jnp.float32(0.0)))
    cnt_sum = jnp.sum(valid.astype(jnp.float32))
    cor_sum = jnp.sum(correct.astype(jnp.float32))

    # Single lane-dense output tile: full 128-lane unmasked stores.
    # row 0 -> loss partial, row 1 -> #proposals, row 2 -> #correct, rows 3..7 zero.
    row = lax.broadcasted_iota(jnp.int32, (1, 8, 128), 1)
    tile = jnp.where(row == 0, loss_sum, jnp.float32(0.0))
    tile = jnp.where(row == 1, cnt_sum, tile)
    tile = jnp.where(row == 2, cor_sum, tile)
    out_ref[...] = tile


def vnclass_loss(all_v_score, v_label, v_l, v_gold, neg_inf=NEG_INF):
    """Returns ((normalized_loss, None), num_prop, num_correct) like VNClassLoss.forward."""
    del neg_inf  # masking with neg_inf is provably redundant for all returned values
    B, L, C = all_v_score.shape
    T = v_label.shape[1]

    b_blk = _choose_bblk(B, L, C, jnp.dtype(all_v_score.dtype).itemsize)
    nb = B // b_blk

    # Tiny metadata reshapes so the kernel sees lane-broadcastable column vectors
    # (no in-kernel relayouts, no SMEM scalar select chains).
    v_label3 = v_label.astype(jnp.int32).reshape(B, T, 1)
    v_gold3 = v_gold.astype(jnp.int32).reshape(B, T, 1)
    v_l3 = v_l.astype(jnp.int32).reshape(B, 1, 1)

    kernel = functools.partial(
        _vnclass_loss_kernel, b_blk=b_blk, max_v_l=T, seq_len=L, num_class=C
    )

    packed = pl.pallas_call(
        kernel,
        grid=(nb,),
        in_specs=[
            pl.BlockSpec((b_blk, L, C), lambda i: (i, 0, 0)),   # streamed / double-buffered
            pl.BlockSpec((b_blk, T, 1), lambda i: (i, 0, 0)),
            pl.BlockSpec((b_blk, 1, 1), lambda i: (i, 0, 0)),
            pl.BlockSpec((b_blk, T, 1), lambda i: (i, 0, 0)),
        ],
        out_specs=pl.BlockSpec((1, 8, 128), lambda i: (i, 0, 0)),
        out_shape=jax.ShapeDtypeStruct((nb, 8, 128), jnp.float32),
        compiler_params=pltpu.CompilerParams(dimension_semantics=("parallel",)),
    )(all_v_score, v_label3, v_l3, v_gold3)

    # Tiny final reduction / normalization in the wrapper (keeps the grid axis parallel).
    totals = jnp.sum(packed, axis=0)                 # (8, 128)
    loss_sum = totals[0, 0]
    num_prop_f = totals[1, 0]
    num_correct_f = totals[2, 0]
    loss = loss_sum / jnp.maximum(num_prop_f, jnp.float32(1.0))
    return (loss, None), num_prop_f.astype(jnp.int32), num_correct_f.astype(jnp.int32)


def _reference(all_v_score, v_label, v_l, v_gold, neg_inf=NEG_INF):
    B, L, C = all_v_score.shape
    max_v_l = v_label.shape[1]
    v_score = jnp.take_along_axis(all_v_score, v_label[:, :, None], axis=1)   # (B, T, C)
    valid = jnp.arange(max_v_l)[None, :] < v_l[:, None]                       # (B, T)
    v_score = jnp.where(valid[:, :, None], v_score, neg_inf)
    log_p = jax.nn.log_softmax(v_score, axis=-1)
    nll = -jnp.take_along_axis(log_p, v_gold[:, :, None], axis=-1)[..., 0]
    loss = jnp.where(valid, nll, 0.0).sum()
    num_prop = valid.sum()
    pred = jnp.argmax(v_score, axis=-1)
    correct = ((pred == v_gold) & valid).sum()
    return loss / jnp.maximum(num_prop.astype(jnp.float32), 1.0), num_prop, correct


if __name__ == "__main__":
    # Small, deterministic shapes: batch=2, seq=16, max verb proposals=8, num_vn_class=128.
    B, L, max_v_l, C = 2, 16, 8, 128
    key = jax.random.PRNGKey(0)
    k1, k2, k3, k4 = jax.random.split(key, 4)

    all_v_score = jax.random.normal(k1, (B, L, C), dtype=jnp.float32)
    v_label = jax.random.randint(k2, (B, max_v_l), 0, L, dtype=jnp.int32)
    v_l = jax.random.randint(k3, (B,), 1, max_v_l + 1, dtype=jnp.int32)
    v_gold = jax.random.randint(k4, (B, max_v_l), 0, C, dtype=jnp.int32)

    (loss, _), num_prop, num_correct = vnclass_loss(all_v_score, v_label, v_l, v_gold)
    jax.block_until_ready(loss)

    ref_loss, ref_prop, ref_cor = _reference(all_v_score, v_label, v_l, v_gold)
    assert jnp.allclose(loss, ref_loss, atol=1e-4), (loss, ref_loss)
    assert int(num_prop) == int(ref_prop), (num_prop, ref_prop)
    assert int(num_correct) == int(ref_cor), (num_correct, ref_cor)

    # TODO(synk): label_mask = opt.v_mask is materialized but never used in the PyTorch
    # forward; the running num_prop/num_ex/num_correct counters are host-side stats and
    # are returned as values here instead of mutated state.
    print("KERNEL_OK")
</pallas_src>

<mosaic_0001>
module attributes {stable_mosaic.version = 11 : i64} {
  func.func @_vnclass_loss_kernel(%arg0: i32, %arg1: memref<2x16x128xf32, #tpu.memory_space<vmem>>, %arg2: memref<2x8x1xi32, #tpu.memory_space<vmem>>, %arg3: memref<2x1x1xi32, #tpu.memory_space<vmem>>, %arg4: memref<2x8x1xi32, #tpu.memory_space<vmem>>, %arg5: memref<1x8x128xf32, #tpu.memory_space<vmem>>) attributes {dimension_semantics = [#tpu.dimension_semantics<parallel>], iteration_bounds = array<i64: 1>, scalar_prefetch = 0 : i64, scratch_operands = 0 : i64, tpu.core_type = #tpu.core_type<tc>, window_params = [{transform_indices = @transform_0, window_bounds = array<i64: 2, 16, 128>}, {transform_indices = @transform_1, window_bounds = array<i64: 2, 8, 1>}, {transform_indices = @transform_2, window_bounds = array<i64: 2, 1, 1>}, {transform_indices = @transform_3, window_bounds = array<i64: 2, 8, 1>}, {transform_indices = @transform_4, window_bounds = array<i64: 1, 8, 128>}]} {
    %c0 = arith.constant 0 : index
    %c0_0 = arith.constant 0 : index
    %c0_1 = arith.constant 0 : index
    %0 = vector.load %arg1[%c0, %c0_0, %c0_1] : memref<2x16x128xf32, #tpu.memory_space<vmem>>, vector<2x16x128xf32>
    %c0_2 = arith.constant 0 : index
    %c0_3 = arith.constant 0 : index
    %c0_4 = arith.constant 0 : index
    %1 = vector.load %arg2[%c0_2, %c0_3, %c0_4] : memref<2x8x1xi32, #tpu.memory_space<vmem>>, vector<2x8x1xi32>
    %c0_5 = arith.constant 0 : index
    %c0_6 = arith.constant 0 : index
    %c0_7 = arith.constant 0 : index
    %2 = vector.load %arg4[%c0_5, %c0_6, %c0_7] : memref<2x8x1xi32, #tpu.memory_space<vmem>>, vector<2x8x1xi32>
    %c0_8 = arith.constant 0 : index
    %c0_9 = arith.constant 0 : index
    %c0_10 = arith.constant 0 : index
    %3 = vector.load %arg3[%c0_8, %c0_9, %c0_10] : memref<2x1x1xi32, #tpu.memory_space<vmem>>, vector<2x1x1xi32>
    %4 = tpu.iota {dimensions = array<i32: 2>} : vector<2x8x16xi32>
    %5 = vector.broadcast %1 : vector<2x8x1xi32> to vector<2x8x16xi32>
    %6 = arith.cmpi eq, %4, %5 : vector<2x8x16xi32>
    %7 = arith.extui %6 : vector<2x8x16xi1> to vector<2x8x16xi32>
    %8 = arith.sitofp %7 : vector<2x8x16xi32> to vector<2x8x16xf32>
    "tpu.trace_start"() <{level = 10 : i32, message = "btl,blc->btc"}> : () -> ()
    %cst = arith.constant dense<0.000000e+00> : vector<2x8x128xf32>
    %9 = tpu.matmul %8, %0, %cst {dimension_numbers = #tpu.dot_dimension_numbers<[2], [1], [1], [2], [0, 0, 0, 1, 1, 2], [0], [0]>} : vector<2x8x16xf32>, vector<2x16x128xf32>, vector<2x8x128xf32> -> vector<2x8x128xf32>
    "tpu.trace_stop"() : () -> ()
    %10 = tpu.iota {dimensions = array<i32: 1>} : vector<2x8x1xi32>
    %11 = vector.broadcast %3 : vector<2x1x1xi32> to vector<2x8x1xi32>
    %12 = arith.cmpi slt, %10, %11 : vector<2x8x1xi32>
    %cst_11 = arith.constant dense<0xFF800000> : vector<2x8xf32>
    %13 = vector.multi_reduction <maximumf>, %9, %cst_11 [2] : vector<2x8x128xf32> to vector<2x8xf32>
    %14 = vector.shape_cast %13 : vector<2x8xf32> to vector<2x8x1xf32>
    %15 = vector.broadcast %14 : vector<2x8x1xf32> to vector<2x8x128xf32>
    %16 = arith.subf %9, %15 : vector<2x8x128xf32>
    %17 = math.exp %16 : vector<2x8x128xf32>
    %cst_12 = arith.constant dense<0.000000e+00> : vector<2x8xf32>
    %18 = vector.multi_reduction <add>, %17, %cst_12 [2] : vector<2x8x128xf32> to vector<2x8xf32>
    %19 = vector.shape_cast %18 : vector<2x8xf32> to vector<2x8x1xf32>
    %20 = math.log %19 : vector<2x8x1xf32>
    %21 = tpu.iota {dimensions = array<i32: 2>} : vector<2x8x128xi32>
    %22 = vector.broadcast %2 : vector<2x8x1xi32> to vector<2x8x128xi32>
    %23 = arith.cmpi eq, %21, %22 : vector<2x8x128xi32>
    %cst_13 = arith.constant 0.000000e+00 : f32
    %24 = vector.broadcast %cst_13 : f32 to vector<2x8x128xf32>
    %25 = arith.select %23, %9, %24 : vector<2x8x128xi1>, vector<2x8x128xf32>
    %cst_14 = arith.constant dense<0.000000e+00> : vector<2x8xf32>
    %26 = vector.multi_reduction <add>, %25, %cst_14 [2] : vector<2x8x128xf32> to vector<2x8xf32>
    %27 = vector.shape_cast %26 : vector<2x8xf32> to vector<2x8x1xf32>
    %28 = arith.addf %14, %20 : vector<2x8x1xf32>
    %29 = arith.subf %28, %27 : vector<2x8x1xf32>
    %30 = vector.broadcast %14 : vector<2x8x1xf32> to vector<2x8x128xf32>
    %31 = arith.cmpf oeq, %9, %30 : vector<2x8x128xf32>
    %c128_i32 = arith.constant 128 : i32
    %32 = vector.broadcast %c128_i32 : i32 to vector<2x8x128xi32>
    %33 = arith.select %31, %21, %32 : vector<2x8x128xi1>, vector<2x8x128xi32>
    %cst_15 = arith.constant dense<2147483647> : vector<2x8xi32>
    %34 = vector.multi_reduction <minsi>, %33, %cst_15 [2] : vector<2x8x128xi32> to vector<2x8xi32>
    %35 = vector.shape_cast %34 : vector<2x8xi32> to vector<2x8x1xi32>
    %36 = arith.cmpi eq, %35, %2 : vector<2x8x1xi32>
    %37 = arith.andi %12, %36 : vector<2x8x1xi1>
    %cst_16 = arith.constant 0.000000e+00 : f32
    %38 = vector.broadcast %cst_16 : f32 to vector<2x8x1xf32>
    %39 = arith.select %12, %29, %38 : vector<2x8x1xi1>, vector<2x8x1xf32>
    %40 = vector.shape_cast %39 : vector<2x8x1xf32> to vector<1x2x8x1xf32>
    %cst_17 = arith.constant dense<0.000000e+00> : vector<1xf32>
    %41 = vector.multi_reduction <add>, %40, %cst_17 [1, 2, 3] : vector<1x2x8x1xf32> to vector<1xf32>
    %42 = vector.shape_cast %41 : vector<1xf32> to vector<1x1x1x1xf32>
    %43 = vector.extract %42[0, 0, 0, 0] : f32 from vector<1x1x1x1xf32>
    %44 = arith.extui %12 : vector<2x8x1xi1> to vector<2x8x1xi32>
    %45 = arith.sitofp %44 : vector<2x8x1xi32> to vector<2x8x1xf32>
    %46 = vector.shape_cast %45 : vector<2x8x1xf32> to vector<1x2x8x1xf32>
    %cst_18 = arith.constant dense<0.000000e+00> : vector<1xf32>
    %47 = vector.multi_reduction <add>, %46, %cst_18 [1, 2, 3] : vector<1x2x8x1xf32> to vector<1xf32>
    %48 = vector.shape_cast %47 : vector<1xf32> to vector<1x1x1x1xf32>
    %49 = vector.extract %48[0, 0, 0, 0] : f32 from vector<1x1x1x1xf32>
    %50 = arith.extui %37 : vector<2x8x1xi1> to vector<2x8x1xi32>
    %51 = arith.sitofp %50 : vector<2x8x1xi32> to vector<2x8x1xf32>
    %52 = vector.shape_cast %51 : vector<2x8x1xf32> to vector<1x2x8x1xf32>
    %cst_19 = arith.constant dense<0.000000e+00> : vector<1xf32>
    %53 = vector.multi_reduction <add>, %52, %cst_19 [1, 2, 3] : vector<1x2x8x1xf32> to vector<1xf32>
    %54 = vector.shape_cast %53 : vector<1xf32> to vector<1x1x1x1xf32>
    %55 = vector.extract %54[0, 0, 0, 0] : f32 from vector<1x1x1x1xf32>
    %56 = tpu.iota {dimensions = array<i32: 1>} : vector<1x8x128xi32>
    %c0_i32 = arith.constant 0 : i32
    %57 = vector.broadcast %c0_i32 : i32 to vector<1x8x128xi32>
    %58 = arith.cmpi eq, %56, %57 : vector<1x8x128xi32>
    %cst_20 = arith.constant 0.000000e+00 : f32
    %59 = vector.broadcast %43 : f32 to vector<1x8x128xf32>
    %60 = vector.broadcast %cst_20 : f32 to vector<1x8x128xf32>
    %61 = arith.select %58, %59, %60 : vector<1x8x128xi1>, vector<1x8x128xf32>
    %c1_i32 = arith.constant 1 : i32
    %62 = vector.broadcast %c1_i32 : i32 to vector<1x8x128xi32>
    %63 = arith.cmpi eq, %56, %62 : vector<1x8x128xi32>
    %64 = vector.broadcast %49 : f32 to vector<1x8x128xf32>
    %65 = arith.select %63, %64, %61 : vector<1x8x128xi1>, vector<1x8x128xf32>
    %c2_i32 = arith.constant 2 : i32
    %66 = vector.broadcast %c2_i32 : i32 to vector<1x8x128xi32>
    %67 = arith.cmpi eq, %56, %66 : vector<1x8x128xi32>
    %68 = vector.broadcast %55 : f32 to vector<1x8x128xf32>
    %69 = arith.select %67, %68, %65 : vector<1x8x128xi1>, vector<1x8x128xf32>
    %c0_21 = arith.constant 0 : index
    %c0_22 = arith.constant 0 : index
    %c0_23 = arith.constant 0 : index
    %70 = vector.load %arg5[%c0_21, %c0_22, %c0_23] : memref<1x8x128xf32, #tpu.memory_space<vmem>>, vector<1x8x128xf32>
    tpu.vector_store %arg5[%c0_21, %c0_22, %c0_23], %69 {strides = array<i32>} : memref<1x8x128xf32, #tpu.memory_space<vmem>>, vector<1x8x128xf32>,
    return
  }
  func.func @transform_0(%arg0: i32) -> (i32, i32, i32) {
    %c0_i32 = arith.constant 0 : i32
    %c0_i32_0 = arith.constant 0 : i32
    %c0_i32_1 = arith.constant 0 : i32
    return %arg0, %c0_i32, %c0_i32_0 : i32, i32, i32
  }
  func.func @transform_1(%arg0: i32) -> (i32, i32, i32) {
    %c0_i32 = arith.constant 0 : i32
    %c0_i32_0 = arith.constant 0 : i32
    %c0_i32_1 = arith.constant 0 : i32
    return %arg0, %c0_i32, %c0_i32_0 : i32, i32, i32
  }
  func.func @transform_2(%arg0: i32) -> (i32, i32, i32) {
    %c0_i32 = arith.constant 0 : i32
    %c0_i32_0 = arith.constant 0 : i32
    %c0_i32_1 = arith.constant 0 : i32
    return %arg0, %c0_i32, %c0_i32_0 : i32, i32, i32
  }
  func.func @transform_3(%arg0: i32) -> (i32, i32, i32) {
    %c0_i32 = arith.constant 0 : i32
    %c0_i32_0 = arith.constant 0 : i32
    %c0_i32_1 = arith.constant 0 : i32
    return %arg0, %c0_i32, %c0_i32_0 : i32, i32, i32
  }
  func.func @transform_4(%arg0: i32) -> (i32, i32, i32) {
    %c0_i32 = arith.constant 0 : i32
    %c0_i32_0 = arith.constant 0 : i32
    %c0_i32_1 = arith.constant 0 : i32
    return %arg0, %c0_i32, %c0_i32_0 : i32, i32, i32
  }
}

</mosaic_0001>

<llo_original>
// kernel: tpu_custom_call.1
$region0: #{tpu_custom_call.1}
  #allocation0 [shape = 'u32[]', space=smem, size = 0x4, offset = 0x4, fixed_abs, tag = 'smem constant byte address 0x4 - core index']
  #allocation1 [shape = 'u32[144,128]{1,0:T(1,128)}', space=vmem, size = 0x12000, scoped, tag = 'internal scratch']
  %s0 = inlined_call_operand.vmem [shape: f32[2,16,128], index: 0, kind: input, shape index: {}]
  %s1 = inlined_call_operand.vmem [shape: s32[2,8,1], index: 1, kind: input, shape index: {}]
  %s2 = inlined_call_operand.vmem [shape: s32[2,1,1], index: 2, kind: input, shape index: {}]
  %s3 = inlined_call_operand.vmem [shape: s32[2,8,1], index: 3, kind: input, shape index: {}]
  %s4 = inlined_call_operand.hbm [shape: f32[1,8,128], index: 4, kind: output, shape index: {}]
  %s5 = sld [smem:[#allocation0]]
  $region26: #{tpu_custom_call.1} parent=0
    _
  %s7 = ssub.s32 1, %s5
  %s8 = scalar_select 0, %s7, %s5
  $region1: #{tpu_custom_call.1} parent=0
    #allocation2 [shape = 'u8[4096]{0}', space=vmem, size = 0x1000, scoped, tag = 'output window, operand 0, single buffered']
    #allocation3 [shape = 's32[1]{0}', space=sflag, size = 0x4, scoped, tag = 'scoped memory for tpu_custom_call.1']
    %9 = vsyncpa [#allocation3], 0
    // Predicated region
    $region2: #{tpu_custom_call.1} parent=1 // pred_check
      _
    $region3: #{tpu_custom_call.1} parent=1 // pred_check_branch
      %11 = sbr.rel (0) target = $region5
    $region4: #{tpu_custom_call.1} parent=1 // pred_region
      _
    $region5: #{tpu_custom_call.1} parent=1 // pred_fallthru
      _
    // Predicated region
    $region6: #{tpu_custom_call.1} parent=1 // pred_check
      _
    $region7: #{tpu_custom_call.1} parent=1 // pred_check_branch
      %13 = sbr.rel (0) target = $region9
    $region8: #{tpu_custom_call.1} parent=1 // pred_region
      _
    $region9: #{tpu_custom_call.1} parent=1 // pred_fallthru
      _
    // Predicated region
    $region10: #{tpu_custom_call.1} parent=1 // pred_check
      _
    $region11: #{tpu_custom_call.1} parent=1 // pred_check_branch
      %15 = sbr.rel (0) target = $region13
    $region12: #{tpu_custom_call.1} parent=1 // pred_region
      _
    $region13: #{tpu_custom_call.1} parent=1 // pred_fallthru
      _
    // Predicated region
    $region14: #{tpu_custom_call.1} parent=1 // pred_check
      _
    $region15: #{tpu_custom_call.1} parent=1 // pred_check_branch
      %17 = sbr.rel (0) target = $region17
    $region16: #{tpu_custom_call.1} parent=1 // pred_region
      _
    $region17: #{tpu_custom_call.1} parent=1 // pred_fallthru
      _
    %v18 = vld [vmem:[%s0] sm:$0xff]
    %v19 = vld [vmem:[%s0 + $0x8] sm:$0xff]
    %v20 = vld [vmem:[%s0 + $0x10] sm:$0xff]
    %v21 = vld [vmem:[%s0 + $0x18] sm:$0xff]
    %v22 = vld [vmem:[%s1] sm:$0xff]
    %v23 = vld [vmem:[%s1 + $0x8] sm:$0xff]
    %v24 = vld [vmem:[%s3] sm:$0xff]
    %v25 = vld [vmem:[%s3 + $0x8] sm:$0xff]
    %v26 = vld [vmem:[%s2] sm:$0x1]
    %v27 = vld [vmem:[%s2 + $0x1] sm:$0x1]
    %v28 = vlaneseq
    %v29 = vand.u32 %v28, 127
    %30 = vset.pattern.permute.xlu0 0
    %31 = vperm.xlu0 %30, %v22
    %v32 = vpop.permute.xlu0 %31
    %33 = vset.pattern.permute.xlu0 0
    %34 = vperm.xlu0 %33, %v23
    %v35 = vpop.permute.xlu0 %34
    %vm36 = vcmp.eq.s32.totalorder %v29, %v32
    %vm37 = vcmp.eq.s32.totalorder %v29, %v35
    %v38 = vsel %vm36, 1, 0
    %v39 = vsel %vm37, 1, 0
    %v40 = vcvt.s32.f32 %v38
    %v41 = vcvt.s32.f32 %v39
    %vm42 = vcmask 130048
    %v44 = vsel %vm42, %v40, 0
    %46 = vmatprep.subr.mxu0 0.0
    %47 = vmatpush1.msra.mxu0 %v18
    %48 = vmatprep.subr.mxu0 0.0
    %49 = vmatpush1.msra.mxu0 %v19
    %50 = vmatprep.subr.mxu0 0.0
    %51 = vmatpush1.msra.mxu0 0.0
    %52 = vmatprep.subr.mxu0 0.0
    %53 = vmatpush1.msra.mxu0 0.0
    %54 = vmatprep.subr.mxu0 0.0
    %55 = vmatpush1.msra.mxu0 0.0
    %56 = vmatprep.subr.mxu0 0.0
    %57 = vmatpush1.msra.mxu0 0.0
    %58 = vmatprep.subr.mxu0 0.0
    %59 = vmatpush1.msra.mxu0 0.0
    %60 = vmatprep.subr.mxu0 0.0
    %61 = vmatpush1.msra.mxu0 0.0
    %62 = vmatprep.subr.mxu0 0.0
    %63 = vmatpush1.msra.mxu0 0.0
    %64 = vmatprep.subr.mxu0 0.0
    %65 = vmatpush1.msra.mxu0 0.0
    %66 = vmatprep.subr.mxu0 0.0
    %67 = vmatpush1.msra.mxu0 0.0
    %68 = vmatprep.subr.mxu0 0.0
    %69 = vmatpush1.msra.mxu0 0.0
    %70 = vmatprep.subr.mxu0 0.0
    %71 = vmatpush1.msra.mxu0 0.0
    %72 = vmatprep.subr.mxu0 0.0
    %73 = vmatpush1.msra.mxu0 0.0
    %74 = vmatprep.subr.mxu0 0.0
    %75 = vmatpush1.msra.mxu0 0.0
    %76 = vmatprep.subr.mxu0 0.0
    %77 = vmatpush1.msra.mxu0 0.0
    %78 = vmatprep.subr.mxu0 0.0
    %79 = vmatpush1.msra.mxu0 0.0
    %80 = vmatprep.subr.mxu0 0.0
    %81 = vmatpush1.msra.mxu0 0.0
    %82 = vmatprep.subr.mxu0 0.0
    %83 = vmatpush1.msra.mxu0 0.0
    %84 = vmatprep.subr.mxu0 0.0
    %85 = vmatpush1.msra.mxu0 0.0
    %86 = vmatprep.subr.mxu0 0.0
    %87 = vmatpush1.msra.mxu0 0.0
    %88 = vmatprep.subr.mxu0 0.0
    %89 = vmatpush1.msra.mxu0 0.0
    %90 = vmatprep.subr.mxu0 0.0
    %91 = vmatpush1.msra.mxu0 0.0
    %92 = vmatprep.subr.mxu0 0.0
    %93 = vmatpush1.msra.mxu0 0.0
    %94 = vmatprep.subr.mxu0 0.0
    %95 = vmatpush1.msra.mxu0 0.0
    %96 = vmatprep.subr.mxu0 0.0
    %97 = vmatpush1.msra.mxu0 0.0
    %98 = vmatprep.subr.mxu0 0.0
    %99 = vmatpush1.msra.mxu0 0.0
    %100 = vmatprep.subr.mxu0 0.0
    %101 = vmatpush1.msra.mxu0 0.0
    %102 = vmatprep.subr.mxu0 0.0
    %103 = vmatpush1.msra.mxu0 0.0
    %104 = vmatprep.subr.mxu0 0.0
    %105 = vmatpush1.msra.mxu0 0.0
    %106 = vmatprep.subr.mxu0 0.0
    %107 = vmatpush1.msra.mxu0 0.0
    %108 = vmatprep.subr.mxu0 0.0
    %109 = vmatpush1.msra.mxu0 0.0
    %110 = vmatprep.mubr.f32.mxu0 0.0
    %111 = vmatmul.mubr.f32.gmra.mrb[0].mxu0 %v44
    %v112 = vpop.f32.mrb[0].mxu0
    %v113 = vadd.f32 0.0, %v112
    %v114 = vpop.f32.mrb[0].mxu0
    %115 = vdwg.mxu0
    %v117 = vsel %vm42, %v41, 0
    %119 = vmatprep.subr.mxu0 0.0
    %120 = vmatpush1.msra.mxu0 %v20
    %121 = vmatprep.subr.mxu0 0.0
    %122 = vmatpush1.msra.mxu0 %v21
    %123 = vmatprep.subr.mxu0 0.0
    %124 = vmatpush1.msra.mxu0 0.0
    %125 = vmatprep.subr.mxu0 0.0
    %126 = vmatpush1.msra.mxu0 0.0
    %127 = vmatprep.subr.mxu0 0.0
    %128 = vmatpush1.msra.mxu0 0.0
    %129 = vmatprep.subr.mxu0 0.0
    %130 = vmatpush1.msra.mxu0 0.0
    %131 = vmatprep.subr.mxu0 0.0
    %132 = vmatpush1.msra.mxu0 0.0
    %133 = vmatprep.subr.mxu0 0.0
    %134 = vmatpush1.msra.mxu0 0.0
    %135 = vmatprep.subr.mxu0 0.0
    %136 = vmatpush1.msra.mxu0 0.0
    %137 = vmatprep.subr.mxu0 0.0
    %138 = vmatpush1.msra.mxu0 0.0
    %139 = vmatprep.subr.mxu0 0.0
    %140 = vmatpush1.msra.mxu0 0.0
    %141 = vmatprep.subr.mxu0 0.0
    %142 = vmatpush1.msra.mxu0 0.0
    %143 = vmatprep.subr.mxu0 0.0
    %144 = vmatpush1.msra.mxu0 0.0
    %145 = vmatprep.subr.mxu0 0.0
    %146 = vmatpush1.msra.mxu0 0.0
    %147 = vmatprep.subr.mxu0 0.0
    %148 = vmatpush1.msra.mxu0 0.0
    %149 = vmatprep.subr.mxu0 0.0
    %150 = vmatpush1.msra.mxu0 0.0
    %151 = vmatprep.subr.mxu0 0.0
    %152 = vmatpush1.msra.mxu0 0.0
    %153 = vmatprep.subr.mxu0 0.0
    %154 = vmatpush1.msra.mxu0 0.0
    %155 = vmatprep.subr.mxu0 0.0
    %156 = vmatpush1.msra.mxu0 0.0
    %157 = vmatprep.subr.mxu0 0.0
    %158 = vmatpush1.msra.mxu0 0.0
    %159 = vmatprep.subr.mxu0 0.0
    %160 = vmatpush1.msra.mxu0 0.0
    %161 = vmatprep.subr.mxu0 0.0
    %162 = vmatpush1.msra.mxu0 0.0
    %163 = vmatprep.subr.mxu0 0.0
    %164 = vmatpush1.msra.mxu0 0.0
    %165 = vmatprep.subr.mxu0 0.0
    %166 = vmatpush1.msra.mxu0 0.0
    %167 = vmatprep.subr.mxu0 0.0
    %168 = vmatpush1.msra.mxu0 0.0
    %169 = vmatprep.subr.mxu0 0.0
    %170 = vmatpush1.msra.mxu0 0.0
    %171 = vmatprep.subr.mxu0 0.0
    %172 = vmatpush1.msra.mxu0 0.0
    %173 = vmatprep.subr.mxu0 0.0
    %174 = vmatpush1.msra.mxu0 0.0
    %175 = vmatprep.subr.mxu0 0.0
    %176 = vmatpush1.msra.mxu0 0.0
    %177 = vmatprep.subr.mxu0 0.0
    %178 = vmatpush1.msra.mxu0 0.0
    %179 = vmatprep.subr.mxu0 0.0
    %180 = vmatpush1.msra.mxu0 0.0
    %181 = vmatprep.subr.mxu0 0.0
    %182 = vmatpush1.msra.mxu0 0.0
    %183 = vmatprep.mubr.f32.mxu0 0.0
    %184 = vmatmul.mubr.f32.gmra.mrb[0].mxu0 %v117
    %v185 = vpop.f32.mrb[0].mxu0
    %v186 = vadd.f32 0.0, %v185
    %v187 = vpop.f32.mrb[0].mxu0
    %188 = vdwg.mxu0
    %v189 = vlaneseq
    %v190 = vshrl.u32 %v189, 7
    %v191 = vlaneseq
    %v192 = vshrl.u32 %v191, 7
    %v193 = vsub.s32 0, %v192
    %v194 = vrot.slane %v26, %v193
    %v195 = vlaneseq
    %v196 = vshrl.u32 %v195, 7
    %v197 = vsub.s32 0, %v196
    %v198 = vrot.slane %v27, %v197
    %vm199 = vcmp.lt.s32.totalorder %v190, %v194
    %vm200 = vcmp.lt.s32.totalorder %v190, %v198
    %201 = vmax.xlane.f32.xlu0 %v113
    %v202 = vpop.xlane.xlu0 %201
    %203 = vmax.xlane.f32.xlu0 %v186
    %v204 = vpop.xlane.xlu0 %203
    %v205 = vsub.f32 %v113, %v202
    %v206 = vsub.f32 %v186, %v204
    %v207 = vmul.f32 %v205, 1.442695
    %v208 = vpow.pop %v207
    %v209 = vmul.f32 %v206, 1.442695
    %v210 = vpow.pop %v209
    %211 = vadd.xlane.f32.xlu0 %v208
    %v212 = vpop.xlane.xlu0 %211
    %213 = vadd.xlane.f32.xlu0 %v210
    %v214 = vpop.xlane.xlu0 %213
    %v215 = vlog2.pop %v212
    %v216 = vmul.f32 %v215, 0.6931472
    %v217 = vlog2.pop %v214
    %v218 = vmul.f32 %v217, 0.6931472
    %219 = vset.pattern.permute.xlu0 0
    %220 = vperm.xlu0 %219, %v24
    %v221 = vpop.permute.xlu0 %220
    %222 = vset.pattern.permute.xlu0 0
    %223 = vperm.xlu0 %222, %v25
    %v224 = vpop.permute.xlu0 %223
    %vm225 = vcmp.eq.s32.totalorder %v29, %v221
    %vm226 = vcmp.eq.s32.totalorder %v29, %v224
    %v227 = vsel %vm225, %v113, 0.0
    %v228 = vsel %vm226, %v186, 0.0
    %229 = vadd.xlane.f32.xlu0 %v227
    %v230 = vpop.xlane.xlu0 %229
    %231 = vadd.xlane.f32.xlu0 %v228
    %v232 = vpop.xlane.xlu0 %231
    %v233 = vadd.f32 %v202, %v216
    %v234 = vadd.f32 %v204, %v218
    %v235 = vsub.f32 %v233, %v230
    %v236 = vsub.f32 %v234, %v232
    %vm237 = vcmp.eq.f32.partialorder %v113, %v202
    %vm238 = vcmp.eq.f32.partialorder %v186, %v204
    %v239 = vsel %vm237, %v29, 128
    %v240 = vsel %vm238, %v29, 128
    %v241 = vand.u32 %v239, 65535
    %v242 = vshra.s32 %v239, 16
    %v243 = vcvt.s32.f32 %v241
    %v244 = vcvt.s32.f32 %v242
    %245 = vmin.xlane.f32.xlu0 %v244
    %v246 = vpop.xlane.xlu0 %245
    %vm247 = vcmp.eq.f32.partialorder %v244, %v246
    %v248 = vsel %vm247, %v243, inf
    %249 = vmin.xlane.f32.xlu0 %v248
    %v250 = vpop.xlane.xlu0 %249
    %v251 = vcvt.f32.s32 %v250
    %v252 = vcvt.f32.s32 %v246
    %v253 = vshll.u32 %v252, 16
    %v254 = vadd.s32 %v253, %v251
    %v255 = vand.u32 %v240, 65535
    %v256 = vshra.s32 %v240, 16
    %v257 = vcvt.s32.f32 %v255
    %v258 = vcvt.s32.f32 %v256
    %259 = vmin.xlane.f32.xlu0 %v258
    %v260 = vpop.xlane.xlu0 %259
    %vm261 = vcmp.eq.f32.partialorder %v258, %v260
    %v262 = vsel %vm261, %v257, inf
    %263 = vmin.xlane.f32.xlu0 %v262
    %v264 = vpop.xlane.xlu0 %263
    %v265 = vcvt.f32.s32 %v264
    %v266 = vcvt.f32.s32 %v260
    %v267 = vshll.u32 %v266, 16
    %v268 = vadd.s32 %v267, %v265
    %vm269 = vcmp.eq.s32.totalorder %v254, %v24
    %vm270 = vcmp.eq.s32.totalorder %v268, %v25
    %vm271 = vmand %vm199, %vm269
    %vm272 = vmand %vm200, %vm270
    %v273 = vsel %vm199, %v235, 0.0
    %v274 = vsel %vm200, %v236, 0.0
    %vm275 = vcmask 7168
    %v276 = vsel %vm275, %v273, 0.0
    %v277 = vsel %vm275, %v274, 0.0
    %v278 = vadd.f32 %v276, %v277
    %279 = vadd.xlane.f32.xlu0 %v278
    %v280 = vpop.xlane.xlu0 %279
    %v281 = vrot.slane %v280, 4
    %v282 = vadd.f32 %v280, %v281
    %v283 = vrot.slane %v282, 2
    %v284 = vadd.f32 %v282, %v283
    %v285 = vrot.slane %v284, 1
    %v286 = vadd.f32 %v284, %v285
    %s287 = vtos %v286
    %v288 = vsel %vm199, 1, 0
    %v289 = vsel %vm200, 1, 0
    %v290 = vcvt.s32.f32 %v288
    %v291 = vcvt.s32.f32 %v289
    %v292 = vsel %vm275, %v290, 0.0
    %v293 = vsel %vm275, %v291, 0.0
    %v294 = vadd.f32 %v292, %v293
    %295 = vadd.xlane.f32.xlu0 %v294
    %v296 = vpop.xlane.xlu0 %295
    %v297 = vrot.slane %v296, 4
    %v298 = vadd.f32 %v296, %v297
    %v299 = vrot.slane %v298, 2
    %v300 = vadd.f32 %v298, %v299
    %v301 = vrot.slane %v300, 1
    %v302 = vadd.f32 %v300, %v301
    %s303 = vtos %v302
    %v304 = vsel %vm271, 1, 0
    %v305 = vsel %vm272, 1, 0
    %v306 = vcvt.s32.f32 %v304
    %v307 = vcvt.s32.f32 %v305
    %v308 = vsel %vm275, %v306, 0.0
    %v309 = vsel %vm275, %v307, 0.0
    %v310 = vadd.f32 %v308, %v309
    %311 = vadd.xlane.f32.xlu0 %v310
    %v312 = vpop.xlane.xlu0 %311
    %v313 = vrot.slane %v312, 4
    %v314 = vadd.f32 %v312, %v313
    %v315 = vrot.slane %v314, 2
    %v316 = vadd.f32 %v314, %v315
    %v317 = vrot.slane %v316, 1
    %v318 = vadd.f32 %v316, %v317
    %s319 = vtos %v318
    %vm320 = vcmp.eq.s32.totalorder %v190, 0
    %v321 = vstv %s287
    %v322 = vsel %vm320, %v321, 0.0
    %vm323 = vcmp.eq.s32.totalorder %v190, 1
    %v324 = vstv %s303
    %v325 = vsel %vm323, %v324, %v322
    %vm326 = vcmp.eq.s32.totalorder %v190, 2
    %v327 = vstv %s319
    %v328 = vsel %vm326, %v327, %v325
    %329 = vst [vmem:[#allocation2] sm:$0xff] %v328
    // Predicated region
    $region18: #{tpu_custom_call.1} parent=1 // pred_check
      _
    $region19: #{tpu_custom_call.1} parent=1 // pred_check_branch
      %331 = sbr.rel (0) target = $region21
    $region20: #{tpu_custom_call.1} parent=1 // pred_region
      %s333 = ssub.s32 128, 128
      %334 = vsyncadd [#allocation3], %s333
      %s336 = sshll.u32 [#allocation2], 4
      %s337 = int_to_ptr.vmem [resolvable:$true] %s336
      %339 = dma.vmem_to_hbm [thread:$0]  %s337, 128, %s4, [#allocation3]
    $region21: #{tpu_custom_call.1} parent=1 // pred_fallthru
      _
    // Predicated region
    $region22: #{tpu_custom_call.1} parent=1 // pred_check
      _
    $region23: #{tpu_custom_call.1} parent=1 // pred_check_branch
      %341 = sbr.rel (0) target = $region25
    $region24: #{tpu_custom_call.1} parent=1 // pred_region
      %342 = dma.done [#allocation3], 128
    $region25: #{tpu_custom_call.1} parent=1 // pred_fallthru
      _
    %343 = vsyncpa [#allocation3], 1

</llo_original>
